<compile_context>
chip_gen: v7x
topology: tpu7x:2x2x1
jax: 0.10.0
libtpu: 0.0.40
codegen_flags: <defaults>
</compile_context>

<pallas_src>
import functools

import jax
import jax.numpy as jnp
from jax.experimental import pallas as pl
from jax.experimental.pallas import tpu as pltpu


def _cdiv(a, b):
    return -(-a // b)


def _round_up(a, b):
    return _cdiv(a, b) * b


def _pick_tile_d(d):
    # Full-row blocks (one contiguous HBM stream per block, one lane-dense
    # output store) for moderate or non-lane-aligned D; only split a very wide,
    # 128-aligned feature axis.
    if d <= 4096 or d % 128 != 0:
        return d
    for cand in (4096, 2048, 1024, 512, 256, 128):
        if d % cand == 0:
            return cand
    return d


def _avg_readout_kernel(seq_ref, out_ref, acc_ref, *, n_rows, tile_rows,
                        chunk_rows, tiles_per_split, first_masked_tile,
                        needs_mask):
    i = pl.program_id(2)                       # reduction (row) axis — last
    tile_d = acc_ref.shape[-1]
    n_chunks = tile_rows // chunk_rows
    global_tile = pl.program_id(0) * tiles_per_split + i

    @pl.when(i == 0)
    def _():
        acc_ref[...] = jnp.zeros_like(acc_ref)

    def accumulate(masked):
        # Chunked accumulation bounds the f32 live range (matters for sub-32-bit
        # inputs with large blocks); VPU-only adds into the (8, tile_d) acc.
        @pl.loop(0, n_chunks)
        def _(k):
            start = pl.multiple_of(k * chunk_rows, chunk_rows)
            blk = seq_ref[pl.ds(start, chunk_rows), :].astype(jnp.float32)
            if masked:
                row = (global_tile * tile_rows + start
                       + jax.lax.broadcasted_iota(jnp.int32, (chunk_rows, 1), 0))
                # select (not multiply) so garbage rows past N never propagate.
                blk = jnp.where(row < n_rows, blk, 0.0)
            acc_ref[...] += jnp.sum(
                blk.reshape(chunk_rows // 8, 8, tile_d), axis=0)

    if needs_mask:
        # Only tiles at/after the first partial tile pay the iota/compare/select.
        @pl.when(global_tile < first_masked_tile)
        def _():
            accumulate(False)

        @pl.when(global_tile >= first_masked_tile)
        def _():
            accumulate(True)
    else:
        accumulate(False)

    @pl.when(i == pl.num_programs(2) - 1)
    def _():
        # Single cross-sublane (XLU) reduce; partial SUM is written (scaling by
        # 1/N and the cross-split combine happen in the wrapper).
        out_ref[...] = jnp.sum(acc_ref[...], axis=0).reshape(1, 1, tile_d)


def avg_readout(seq, *, target_block_bytes=8 << 20, min_pallas_bytes=128 << 10):
    """Pallas equivalent of AvgReadout.forward: mean over axis 0."""
    if seq.ndim == 0:
        return seq
    if seq.ndim == 1:
        return jnp.mean(seq)

    orig_trailing = seq.shape[1:]
    if seq.ndim > 2:
        seq = seq.reshape(seq.shape[0], -1)
    n, d = seq.shape
    out_dtype = seq.dtype
    itemsize = jnp.dtype(seq.dtype).itemsize

    # Tiny inputs: pallas_call launch overhead dominates — plain XLA reduction.
    if n * d * itemsize < min_pallas_bytes or n < 2 or d == 0:
        return jnp.mean(seq, axis=0).reshape(orig_trailing)

    tile_d = _pick_tile_d(d)
    num_d_tiles = d // tile_d

    # Chunk: unit of in-kernel accumulation (multiple of 8 sublanes, ~<=2 MiB).
    chunk_rows = max(8, min(512,
                            (2 << 20) // (tile_d * itemsize) // 8 * 8,
                            _round_up(n, 8)))
    # Row block: ~target_block_bytes of input per block, multiple of chunk_rows,
    # capped at N rounded up to the chunk size.
    tile_rows = (target_block_bytes // (tile_d * itemsize)) \
        // chunk_rows * chunk_rows
    tile_rows = max(chunk_rows, tile_rows)
    tile_rows = min(tile_rows, _round_up(n, chunk_rows))

    num_row_tiles = _cdiv(n, tile_rows)

    # Megacore: when there is only one feature tile, split the row range across
    # a leading "parallel" axis so both v7x TensorCores stream HBM; each split
    # writes its own partial-sum row.  Harmless on single-TC v5e/v6e.
    n_splits = 2 if (num_d_tiles == 1 and num_row_tiles >= 2) else 1
    tiles_per_split = _cdiv(num_row_tiles, n_splits)

    needs_mask = (n % tile_rows != 0) or (n_splits * tiles_per_split
                                          != num_row_tiles)
    first_masked_tile = (num_row_tiles - 1 if n % tile_rows != 0
                         else num_row_tiles)
    last_tile = num_row_tiles - 1

    def in_index_map(s, j, i):
        # Clamp duplicate tiles (the last split may over-run the tile count);
        # they are fully masked in-kernel via the intended global row index.
        return (jnp.minimum(s * tiles_per_split + i, last_tile), j)

    # Scoped VMEM: double-buffered input blocks + f32 chunk temp + headroom,
    # capped well under v7x's 64 MiB physical VMEM.
    block_bytes = tile_rows * tile_d * itemsize
    chunk_f32_bytes = chunk_rows * tile_d * 4
    vmem_limit = 2 * block_bytes + 2 * chunk_f32_bytes + (8 << 20)
    vmem_limit = int(min(max(vmem_limit, 32 << 20), 48 << 20))

    partial = pl.pallas_call(
        functools.partial(
            _avg_readout_kernel, n_rows=n, tile_rows=tile_rows,
            chunk_rows=chunk_rows, tiles_per_split=tiles_per_split,
            first_masked_tile=first_masked_tile, needs_mask=needs_mask),
        out_shape=jax.ShapeDtypeStruct((n_splits, 1, d), jnp.float32),
        grid_spec=pltpu.PrefetchScalarGridSpec(
            num_scalar_prefetch=0,
            grid=(n_splits, num_d_tiles, tiles_per_split),   # reduction last
            in_specs=[pl.BlockSpec((tile_rows, tile_d), in_index_map)],
            out_specs=pl.BlockSpec((1, 1, tile_d), lambda s, j, i: (s, 0, j)),
            scratch_shapes=[pltpu.VMEM((8, tile_d), jnp.float32)],
        ),
        compiler_params=pltpu.CompilerParams(
            dimension_semantics=("parallel", "parallel", "arbitrary"),
            vmem_limit_bytes=vmem_limit,
        ),
    )(seq)

    mean = jnp.sum(partial.reshape(n_splits, d), axis=0) * (1.0 / n)
    return mean.astype(out_dtype).reshape(orig_trailing)


if __name__ == "__main__":
    key = jax.random.PRNGKey(0)
    k1, k2, k3, k4, k5 = jax.random.split(key, 5)

    # 1) nodes x hidden, single-block kernel path.
    seq1 = jax.random.normal(k1, (512, 128), dtype=jnp.float32)
    out1 = avg_readout(seq1)
    jax.block_until_ready(out1)
    assert out1.shape == (128,)
    assert jnp.allclose(out1, jnp.mean(seq1, axis=0), atol=1e-4, rtol=1e-4)

    # 2) non-multiple-of-8 N and non-128-multiple D (full-row block, tail mask,
    #    no wrapper padding).
    seq2 = jax.random.normal(k2, (1000, 96), dtype=jnp.float32)
    out2 = avg_readout(seq2)
    jax.block_until_ready(out2)
    assert out2.shape == (96,)
    assert jnp.allclose(out2, jnp.mean(seq2, axis=0), atol=1e-4, rtol=1e-4)

    # 3) multi-step reduction + 2-way row split (small blocks to exercise it).
    seq3 = jax.random.normal(k3, (2048, 256), dtype=jnp.float32)
    out3 = avg_readout(seq3, target_block_bytes=256 << 10)
    jax.block_until_ready(out3)
    assert jnp.allclose(out3, jnp.mean(seq3, axis=0), atol=1e-4, rtol=1e-4)

    # 4) odd tile count: row split with a clamped (fully masked) duplicate tile.
    seq4 = jax.random.normal(k4, (1280, 128), dtype=jnp.float32)
    out4 = avg_readout(seq4, target_block_bytes=128 << 10)
    jax.block_until_ready(out4)
    assert jnp.allclose(out4, jnp.mean(seq4, axis=0), atol=1e-4, rtol=1e-4)

    # 5) bf16 input (f32 accumulation in-kernel).
    seq5 = jax.random.normal(k5, (1000, 96), dtype=jnp.float32).astype(jnp.bfloat16)
    out5 = avg_readout(seq5)
    jax.block_until_ready(out5)
    ref5 = (jnp.sum(seq5.astype(jnp.float32), axis=0) / 1000.0).astype(jnp.bfloat16)
    assert jnp.allclose(out5.astype(jnp.float32), ref5.astype(jnp.float32),
                        atol=2e-2, rtol=2e-2)

    # 6) tiny input takes the XLA fast path (no pallas launch).
    seq6 = jax.random.normal(k1, (64, 128), dtype=jnp.float32)
    out6 = avg_readout(seq6)
    jax.block_until_ready(out6)
    assert jnp.allclose(out6, jnp.mean(seq6, axis=0), atol=1e-5, rtol=1e-5)

    print("KERNEL_OK")
</pallas_src>

<mosaic_0001>
module attributes {stable_mosaic.version = 11 : i64} {
  func.func @_avg_readout_kernel(%arg0: i32, %arg1: i32, %arg2: i32, %arg3: memref<512x128xf32, #tpu.memory_space<vmem>>, %arg4: memref<1x1x128xf32, #tpu.memory_space<vmem>>, %arg5: memref<8x128xf32, #tpu.memory_space<vmem>>) attributes {dimension_semantics = [#tpu.dimension_semantics<parallel>, #tpu.dimension_semantics<parallel>, #tpu.dimension_semantics<arbitrary>], iteration_bounds = array<i64: 1, 1, 1>, scalar_prefetch = 0 : i64, scratch_operands = 1 : i64, tpu.core_type = #tpu.core_type<tc>, window_params = [{transform_indices = @transform_0, window_bounds = array<i64: 512, 128>}, {transform_indices = @transform_1, window_bounds = array<i64: 1, 1, 128>}]} {
    %c0_i32 = arith.constant 0 : i32
    %0 = arith.cmpi eq, %arg2, %c0_i32 : i32
    %1 = arith.extui %0 : i1 to i32
    %c0_i32_0 = arith.constant 0 : i32
    %2 = arith.cmpi ne, %1, %c0_i32_0 : i32
    scf.if %2 {
      %cst_10 = arith.constant 0.000000e+00 : f32
      %17 = vector.broadcast %cst_10 : f32 to vector<8x128xf32>
      %c0_11 = arith.constant 0 : index
      %c0_12 = arith.constant 0 : index
      %18 = vector.load %arg5[%c0_11, %c0_12] : memref<8x128xf32, #tpu.memory_space<vmem>>, vector<8x128xf32>
      tpu.vector_store %arg5[%c0_11, %c0_12], %17 {strides = array<i32>} : memref<8x128xf32, #tpu.memory_space<vmem>>, vector<8x128xf32>,
    } else {
    }
    %c0_i32_1 = arith.constant 0 : i32
    %c1_i32 = arith.constant 1 : i32
    %3 = arith.muli %c0_i32_1, %c1_i32 : i32
    %c0_i32_2 = arith.constant 0 : i32
    %4 = arith.addi %c0_i32_2, %3 : i32
    %c512_i32 = arith.constant 512 : i32
    %5 = arith.muli %4, %c512_i32 : i32
    %6 = tpu.assume_multiple %5, 512 : i32
    %7 = arith.index_cast %6 : i32 to index
    %c0 = arith.constant 0 : index
    %8 = vector.load %arg3[%7, %c0] : memref<512x128xf32, #tpu.memory_space<vmem>>, vector<512x128xf32>
    %c0_3 = arith.constant 0 : index
    %c0_4 = arith.constant 0 : index
    %9 = vector.load %arg5[%c0_3, %c0_4] : memref<8x128xf32, #tpu.memory_space<vmem>>, vector<8x128xf32>
    %10 = vector.shape_cast %8 : vector<512x128xf32> to vector<64x8x128xf32>
    %cst = arith.constant dense<0.000000e+00> : vector<8x128xf32>
    %11 = vector.multi_reduction <add>, %10, %cst [0] : vector<64x8x128xf32> to vector<8x128xf32>
    %12 = arith.addf %9, %11 : vector<8x128xf32>
    %c0_5 = arith.constant 0 : index
    %c0_6 = arith.constant 0 : index
    %13 = vector.load %arg5[%c0_5, %c0_6] : memref<8x128xf32, #tpu.memory_space<vmem>>, vector<8x128xf32>
    tpu.vector_store %arg5[%c0_5, %c0_6], %12 {strides = array<i32>} : memref<8x128xf32, #tpu.memory_space<vmem>>, vector<8x128xf32>,
    %c1_i32_7 = arith.constant 1 : i32
    %c0_i32_8 = arith.constant 0 : i32
    %14 = arith.cmpi eq, %arg2, %c0_i32_8 : i32
    %15 = arith.extui %14 : i1 to i32
    %c0_i32_9 = arith.constant 0 : i32
    %16 = arith.cmpi ne, %15, %c0_i32_9 : i32
    scf.if %16 {
      %c0_10 = arith.constant 0 : index
      %c0_11 = arith.constant 0 : index
      %17 = vector.load %arg5[%c0_10, %c0_11] : memref<8x128xf32, #tpu.memory_space<vmem>>, vector<8x128xf32>
      %cst_12 = arith.constant dense<0.000000e+00> : vector<128xf32>
      %18 = vector.multi_reduction <add>, %17, %cst_12 [0] : vector<8x128xf32> to vector<128xf32>
      %19 = vector.shape_cast %18 : vector<128xf32> to vector<1x1x128xf32>
      %c0_13 = arith.constant 0 : index
      %c0_14 = arith.constant 0 : index
      %c0_15 = arith.constant 0 : index
      %20 = vector.load %arg4[%c0_13, %c0_14, %c0_15] : memref<1x1x128xf32, #tpu.memory_space<vmem>>, vector<1x1x128xf32>
      tpu.vector_store %arg4[%c0_13, %c0_14, %c0_15], %19 {strides = array<i32>} : memref<1x1x128xf32, #tpu.memory_space<vmem>>, vector<1x1x128xf32>,
    } else {
    }
    return
  }
  func.func @transform_0(%arg0: i32, %arg1: i32, %arg2: i32) -> (i32, i32) {
    %c1_i32 = arith.constant 1 : i32
    %0 = arith.muli %arg0, %c1_i32 : i32
    %1 = arith.addi %0, %arg2 : i32
    %c0_i32 = arith.constant 0 : i32
    %2 = arith.minsi %1, %c0_i32 : i32
    %c0_i32_0 = arith.constant 0 : i32
    return %2, %arg1 : i32, i32
  }
  func.func @transform_1(%arg0: i32, %arg1: i32, %arg2: i32) -> (i32, i32, i32) {
    %c0_i32 = arith.constant 0 : i32
    %c0_i32_0 = arith.constant 0 : i32
    return %arg0, %c0_i32, %arg1 : i32, i32, i32
  }
}

</mosaic_0001>

<llo_original>
// kernel: tpu_custom_call.1
$region0: #{tpu_custom_call.1}
  #allocation0 [shape = 'u32[]', space=smem, size = 0x4, offset = 0x4, fixed_abs, tag = 'smem constant byte address 0x4 - core index']
  #allocation1 [shape = 'u32[144,128]{1,0:T(1,128)}', space=vmem, size = 0x12000, scoped, tag = 'internal scratch']
  #allocation2 [shape = 'f32[8,128]{1,0:T(8,128)}', space=vmem, size = 0x1000, scoped, tag = 'scratch operand']
  %s0 = inlined_call_operand.hbm [shape: f32[512,128], index: 0, kind: input, shape index: {}]
  %s1 = inlined_call_operand.hbm [shape: f32[1,1,128], index: 1, kind: output, shape index: {}]
  %s2 = sld [smem:[#allocation0]]
  $region26: #{tpu_custom_call.1} parent=0
    _
  %s4 = ssub.s32 1, %s2
  %s5 = scalar_select 0, %s4, %s2
  $region1: #{tpu_custom_call.1} parent=0
    #allocation3 [shape = 'u8[262144]{0}', space=vmem, size = 0x40000, scoped, tag = 'input window, operand 0, single buffered']
    #allocation4 [shape = 's32[1]{0}', space=sflag, size = 0x4, scoped, tag = 'scoped memory for tpu_custom_call.1']
    #allocation5 [shape = 's32[1]{0}', space=sflag, size = 0x4, scoped, tag = 'scoped memory for tpu_custom_call.1']
    #allocation6 [shape = 'u8[512]{0}', space=vmem, size = 0x400, scoped, tag = 'output window, operand 0, single buffered']
    %6 = vsyncpa [#allocation4], 0
    %7 = vsyncpa [#allocation5], 0
    // Predicated region
    $region2: #{tpu_custom_call.1} parent=1 // pred_check
      _
    $region3: #{tpu_custom_call.1} parent=1 // pred_check_branch
      %9 = sbr.rel (0) target = $region5
    $region4: #{tpu_custom_call.1} parent=1 // pred_region
      %s10 = sadd.s32 0, 0
      %p11 = scmp.lt.s32.totalorder %s10, 0
      %s12 = scalar_select %p11, %s10, 0
      %s13 = smul.u32 64, %s12
      %s15 = ssub.s32 8192, 8192
      %16 = vsyncadd [#allocation4], %s15
      %s17 = smul.addr %s13, 128
      %s18 = scalar_lea.hbm %s0, %s17
      %s19 = sshll.u32 [#allocation3], 4
      %s20 = int_to_ptr.vmem [resolvable:$true] %s19
      %25 = dma.hbm_to_vmem [thread:$0]  %s18, 8192, %s20, [#allocation4], 128, 128, 8
    $region5: #{tpu_custom_call.1} parent=1 // pred_fallthru
      _
    // Predicated region
    $region6: #{tpu_custom_call.1} parent=1 // pred_check
      _
    $region7: #{tpu_custom_call.1} parent=1 // pred_check_branch
      %27 = sbr.rel (0) target = $region9
    $region8: #{tpu_custom_call.1} parent=1 // pred_region
      %28 = dma.done [#allocation4], 8192
    $region9: #{tpu_custom_call.1} parent=1 // pred_fallthru
      _
    %s29 = sadd.s32 0, 0
    %p30 = scmp.lt.s32.totalorder %s29, 0
    %s31 = scalar_select %p30, %s29, 0
    %s32 = smul.u32 64, %s31
    %p33 = scmp.eq.s32.totalorder 0, 0
    // Predicated region
    $region10: #{tpu_custom_call.1} parent=1 // pred_check
      %p34 = pneg %p33
    $region11: #{tpu_custom_call.1} parent=1 // pred_check_branch
      %36 = sbr.rel (%p34) target = $region13
    $region12: #{tpu_custom_call.1} parent=1 // pred_region
      %37 = vst [vmem:[#allocation2] sm:$0xff] 0.0
    $region13: #{tpu_custom_call.1} parent=1 // pred_fallthru
      _
    %v38 = vld [vmem:[#allocation3] sm:$0xff]
    %v39 = vld [vmem:[#allocation3 + $0x8] sm:$0xff]
    %v40 = vld [vmem:[#allocation3 + $0x10] sm:$0xff]
    %v41 = vld [vmem:[#allocation3 + $0x18] sm:$0xff]
    %v42 = vld [vmem:[#allocation3 + $0x20] sm:$0xff]
    %v43 = vld [vmem:[#allocation3 + $0x28] sm:$0xff]
    %v44 = vld [vmem:[#allocation3 + $0x30] sm:$0xff]
    %v45 = vld [vmem:[#allocation3 + $0x38] sm:$0xff]
    %v46 = vld [vmem:[#allocation3 + $0x40] sm:$0xff]
    %v47 = vld [vmem:[#allocation3 + $0x48] sm:$0xff]
    %v48 = vld [vmem:[#allocation3 + $0x50] sm:$0xff]
    %v49 = vld [vmem:[#allocation3 + $0x58] sm:$0xff]
    %v50 = vld [vmem:[#allocation3 + $0x60] sm:$0xff]
    %v51 = vld [vmem:[#allocation3 + $0x68] sm:$0xff]
    %v52 = vld [vmem:[#allocation3 + $0x70] sm:$0xff]
    %v53 = vld [vmem:[#allocation3 + $0x78] sm:$0xff]
    %v54 = vld [vmem:[#allocation3 + $0x80] sm:$0xff]
    %v55 = vld [vmem:[#allocation3 + $0x88] sm:$0xff]
    %v56 = vld [vmem:[#allocation3 + $0x90] sm:$0xff]
    %v57 = vld [vmem:[#allocation3 + $0x98] sm:$0xff]
    %v58 = vld [vmem:[#allocation3 + $0xa0] sm:$0xff]
    %v59 = vld [vmem:[#allocation3 + $0xa8] sm:$0xff]
    %v60 = vld [vmem:[#allocation3 + $0xb0] sm:$0xff]
    %v61 = vld [vmem:[#allocation3 + $0xb8] sm:$0xff]
    %v62 = vld [vmem:[#allocation3 + $0xc0] sm:$0xff]
    %v63 = vld [vmem:[#allocation3 + $0xc8] sm:$0xff]
    %v64 = vld [vmem:[#allocation3 + $0xd0] sm:$0xff]
    %v65 = vld [vmem:[#allocation3 + $0xd8] sm:$0xff]
    %v66 = vld [vmem:[#allocation3 + $0xe0] sm:$0xff]
    %v67 = vld [vmem:[#allocation3 + $0xe8] sm:$0xff]
    %v68 = vld [vmem:[#allocation3 + $0xf0] sm:$0xff]
    %v69 = vld [vmem:[#allocation3 + $0xf8] sm:$0xff]
    %v70 = vld [vmem:[#allocation3 + $0x100] sm:$0xff]
    %v71 = vld [vmem:[#allocation3 + $0x108] sm:$0xff]
    %v72 = vld [vmem:[#allocation3 + $0x110] sm:$0xff]
    %v73 = vld [vmem:[#allocation3 + $0x118] sm:$0xff]
    %v74 = vld [vmem:[#allocation3 + $0x120] sm:$0xff]
    %v75 = vld [vmem:[#allocation3 + $0x128] sm:$0xff]
    %v76 = vld [vmem:[#allocation3 + $0x130] sm:$0xff]
    %v77 = vld [vmem:[#allocation3 + $0x138] sm:$0xff]
    %v78 = vld [vmem:[#allocation3 + $0x140] sm:$0xff]
    %v79 = vld [vmem:[#allocation3 + $0x148] sm:$0xff]
    %v80 = vld [vmem:[#allocation3 + $0x150] sm:$0xff]
    %v81 = vld [vmem:[#allocation3 + $0x158] sm:$0xff]
    %v82 = vld [vmem:[#allocation3 + $0x160] sm:$0xff]
    %v83 = vld [vmem:[#allocation3 + $0x168] sm:$0xff]
    %v84 = vld [vmem:[#allocation3 + $0x170] sm:$0xff]
    %v85 = vld [vmem:[#allocation3 + $0x178] sm:$0xff]
    %v86 = vld [vmem:[#allocation3 + $0x180] sm:$0xff]
    %v87 = vld [vmem:[#allocation3 + $0x188] sm:$0xff]
    %v88 = vld [vmem:[#allocation3 + $0x190] sm:$0xff]
    %v89 = vld [vmem:[#allocation3 + $0x198] sm:$0xff]
    %v90 = vld [vmem:[#allocation3 + $0x1a0] sm:$0xff]
    %v91 = vld [vmem:[#allocation3 + $0x1a8] sm:$0xff]
    %v92 = vld [vmem:[#allocation3 + $0x1b0] sm:$0xff]
    %v93 = vld [vmem:[#allocation3 + $0x1b8] sm:$0xff]
    %v94 = vld [vmem:[#allocation3 + $0x1c0] sm:$0xff]
    %v95 = vld [vmem:[#allocation3 + $0x1c8] sm:$0xff]
    %v96 = vld [vmem:[#allocation3 + $0x1d0] sm:$0xff]
    %v97 = vld [vmem:[#allocation3 + $0x1d8] sm:$0xff]
    %v98 = vld [vmem:[#allocation3 + $0x1e0] sm:$0xff]
    %v99 = vld [vmem:[#allocation3 + $0x1e8] sm:$0xff]
    %v100 = vld [vmem:[#allocation3 + $0x1f0] sm:$0xff]
    %v101 = vld [vmem:[#allocation3 + $0x1f8] sm:$0xff]
    %v102 = vld [vmem:[#allocation2] sm:$0xff]
    %v103 = vadd.f32 %v38, %v39
    %v104 = vadd.f32 %v103, %v40
    %v105 = vadd.f32 %v104, %v41
    %v106 = vadd.f32 %v105, %v42
    %v107 = vadd.f32 %v106, %v43
    %v108 = vadd.f32 %v107, %v44
    %v109 = vadd.f32 %v108, %v45
    %v110 = vadd.f32 %v109, %v46
    %v111 = vadd.f32 %v110, %v47
    %v112 = vadd.f32 %v111, %v48
    %v113 = vadd.f32 %v112, %v49
    %v114 = vadd.f32 %v113, %v50
    %v115 = vadd.f32 %v114, %v51
    %v116 = vadd.f32 %v115, %v52
    %v117 = vadd.f32 %v116, %v53
    %v118 = vadd.f32 %v117, %v54
    %v119 = vadd.f32 %v118, %v55
    %v120 = vadd.f32 %v119, %v56
    %v121 = vadd.f32 %v120, %v57
    %v122 = vadd.f32 %v121, %v58
    %v123 = vadd.f32 %v122, %v59
    %v124 = vadd.f32 %v123, %v60
    %v125 = vadd.f32 %v124, %v61
    %v126 = vadd.f32 %v125, %v62
    %v127 = vadd.f32 %v126, %v63
    %v128 = vadd.f32 %v127, %v64
    %v129 = vadd.f32 %v128, %v65
    %v130 = vadd.f32 %v129, %v66
    %v131 = vadd.f32 %v130, %v67
    %v132 = vadd.f32 %v131, %v68
    %v133 = vadd.f32 %v132, %v69
    %v134 = vadd.f32 %v133, %v70
    %v135 = vadd.f32 %v134, %v71
    %v136 = vadd.f32 %v135, %v72
    %v137 = vadd.f32 %v136, %v73
    %v138 = vadd.f32 %v137, %v74
    %v139 = vadd.f32 %v138, %v75
    %v140 = vadd.f32 %v139, %v76
    %v141 = vadd.f32 %v140, %v77
    %v142 = vadd.f32 %v141, %v78
    %v143 = vadd.f32 %v142, %v79
    %v144 = vadd.f32 %v143, %v80
    %v145 = vadd.f32 %v144, %v81
    %v146 = vadd.f32 %v145, %v82
    %v147 = vadd.f32 %v146, %v83
    %v148 = vadd.f32 %v147, %v84
    %v149 = vadd.f32 %v148, %v85
    %v150 = vadd.f32 %v149, %v86
    %v151 = vadd.f32 %v150, %v87
    %v152 = vadd.f32 %v151, %v88
    %v153 = vadd.f32 %v152, %v89
    %v154 = vadd.f32 %v153, %v90
    %v155 = vadd.f32 %v154, %v91
    %v156 = vadd.f32 %v155, %v92
    %v157 = vadd.f32 %v156, %v93
    %v158 = vadd.f32 %v157, %v94
    %v159 = vadd.f32 %v158, %v95
    %v160 = vadd.f32 %v159, %v96
    %v161 = vadd.f32 %v160, %v97
    %v162 = vadd.f32 %v161, %v98
    %v163 = vadd.f32 %v162, %v99
    %v164 = vadd.f32 %v163, %v100
    %v165 = vadd.f32 %v164, %v101
    %v166 = vadd.f32 %v102, %v165
    %167 = vst [vmem:[#allocation2] sm:$0xff] %v166
    // Predicated region
    $region14: #{tpu_custom_call.1} parent=1 // pred_check
      %p168 = pneg %p33
    $region15: #{tpu_custom_call.1} parent=1 // pred_check_branch
      %170 = sbr.rel (%p168) target = $region17
    $region16: #{tpu_custom_call.1} parent=1 // pred_region
      %v171 = vld [vmem:[#allocation2] sm:$0xff]
      %v172 = vrot.slane %v171, 4
      %v173 = vadd.f32 %v171, %v172
      %v174 = vrot.slane %v173, 2
      %v175 = vadd.f32 %v173, %v174
      %v176 = vrot.slane %v175, 1
      %v177 = vadd.f32 %v175, %v176
      %178 = vst [vmem:[#allocation6] sm:$0x1] %v177
    $region17: #{tpu_custom_call.1} parent=1 // pred_fallthru
      _
    // Predicated region
    $region18: #{tpu_custom_call.1} parent=1 // pred_check
      _
    $region19: #{tpu_custom_call.1} parent=1 // pred_check_branch
      %180 = sbr.rel (0) target = $region21
    $region20: #{tpu_custom_call.1} parent=1 // pred_region
      %s182 = ssub.s32 16, 16
      %183 = vsyncadd [#allocation5], %s182
      %s185 = sshll.u32 [#allocation6], 4
      %s186 = int_to_ptr.vmem [resolvable:$true] %s185
      %188 = dma.vmem_to_hbm [thread:$0]  %s186, 16, %s1, [#allocation5]
    $region21: #{tpu_custom_call.1} parent=1 // pred_fallthru
      _
    // Predicated region
    $region22: #{tpu_custom_call.1} parent=1 // pred_check
      _
    $region23: #{tpu_custom_call.1} parent=1 // pred_check_branch
      %190 = sbr.rel (0) target = $region25
    $region24: #{tpu_custom_call.1} parent=1 // pred_region
      %191 = dma.done [#allocation5], 16
    $region25: #{tpu_custom_call.1} parent=1 // pred_fallthru
      _
    %192 = vsyncpa [#allocation4], 1
    %193 = vsyncpa [#allocation5], 1

</llo_original>
